<compile_context>
chip_gen: v5e
topology: v5e:2x2
jax: 0.10.0
libtpu: 0.0.40
codegen_flags: <defaults>
</compile_context>

<pallas_src>
import functools

import jax
import jax.numpy as jnp
from jax.experimental import pallas as pl
from jax.experimental.pallas import tpu as pltpu


def _round_up(n: int, m: int) -> int:
    return ((n + m - 1) // m) * m


def _adaptered_kernel(x_ref, wo_ref, bo_ref, w1_ref, b1_ref, w2_ref, b2_ref, o_ref):
    """Fused: orig Linear -> adapter down-proj -> ReLU -> up-proj -> +residual."""
    x = x_ref[...]                                   # (tm, D), native (bf16) dtype

    # orig_layer: Linear(D, D).  bf16 x bf16 operands, f32 accumulation on the MXU.
    h = jnp.dot(x, wo_ref[...], preferred_element_type=jnp.float32) + bo_ref[...]

    # Adapter down-projection + ReLU (bottleneck padded to 128 lanes; pads are zero).
    a = jnp.dot(h.astype(w1_ref.dtype), w1_ref[...],
                preferred_element_type=jnp.float32) + b1_ref[...]
    a = jnp.maximum(a, 0.0)

    # Adapter up-projection + residual around the adapter (residual is h, kept in f32).
    out = jnp.dot(a.astype(w2_ref.dtype), w2_ref[...],
                  preferred_element_type=jnp.float32) + b2_ref[...] + h

    o_ref[...] = out.astype(o_ref.dtype)


def _pallas_forward(x2, wo, bo2, w1, b1, w2, b2, *, tm, single_buffer_weights):
    M, D = x2.shape
    size_p = w1.shape[1]

    if single_buffer_weights:
        # Grid-invariant operands: their block index never changes, so one VMEM buffer
        # suffices (for real D=2048 this frees ~8-16 MiB for larger row tiles).
        inv = dict(pipeline_mode=pl.Buffered(1))
    else:
        inv = {}

    return pl.pallas_call(
        _adaptered_kernel,
        out_shape=jax.ShapeDtypeStruct((M, D), x2.dtype),
        grid_spec=pltpu.PrefetchScalarGridSpec(
            num_scalar_prefetch=0,
            grid=(M // tm,),
            in_specs=[
                pl.BlockSpec((tm, D), lambda i: (i, 0)),             # x rows (pipelined)
                pl.BlockSpec((D, D), lambda i: (0, 0), **inv),       # Wo (orig linear)
                pl.BlockSpec((1, D), lambda i: (0, 0), **inv),       # bo
                pl.BlockSpec((D, size_p), lambda i: (0, 0), **inv),  # W1 (down)
                pl.BlockSpec((1, size_p), lambda i: (0, 0), **inv),  # b1
                pl.BlockSpec((size_p, D), lambda i: (0, 0), **inv),  # W2 (up)
                pl.BlockSpec((1, D), lambda i: (0, 0), **inv),       # b2
            ],
            out_specs=pl.BlockSpec((tm, D), lambda i: (i, 0)),
        ),
        compiler_params=pltpu.CompilerParams(
            dimension_semantics=("parallel",),
            # Explicit budget, sized so it also fits v7x's 64 MiB physical VMEM.  With
            # D=2048 bf16 weights + tm=256 activation tiles this leaves ample headroom.
            vmem_limit_bytes=48 * 1024 * 1024,
        ),
    )(x2, wo, bo2, w1, b1, w2, b2)


def adaptered_forward(x, wo, bo, w1, b1, w2, b2, *, tm=256):
    """x: [B, S, D]; weights in [in_dim, out_dim] layout.  Returns a 1-tuple."""
    B, S, D = x.shape
    size = w1.shape[1]
    M = B * S

    # Pad the adapter bottleneck up to a lane-friendly width (exact no-op, see header).
    size_p = _round_up(max(size, 1), 128)
    w1p = jnp.zeros((D, size_p), w1.dtype).at[:, :size].set(w1)
    b1p = jnp.zeros((1, size_p), jnp.float32).at[0, :size].set(b1.astype(jnp.float32))
    w2p = jnp.zeros((size_p, D), w2.dtype).at[:size, :].set(w2)

    # Row tiling: MXU-sized tile; pad the flattened row count up to a tile multiple so
    # arbitrary B*S works (padded rows are computed on zeros and sliced off afterwards).
    tm_eff = min(tm, _round_up(M, 8))
    M_pad = _round_up(M, tm_eff)
    x2 = x.reshape(M, D)
    if M_pad != M:
        x2 = jnp.zeros((M_pad, D), x.dtype).at[:M, :].set(x2)

    bo2 = bo.astype(jnp.float32).reshape(1, D)
    b22 = b2.astype(jnp.float32).reshape(1, D)

    run = functools.partial(_pallas_forward, x2, wo, bo2, w1p, b1p, w2p, b22, tm=tm_eff)
    try:
        out2 = run(single_buffer_weights=True)
        jax.block_until_ready(out2)   # force any compile/runtime failure inside the try
    except Exception:
        # pipeline_mode=pl.Buffered(1) needs a recent jax/libtpu; fall back to the
        # default (double-buffered) pipelining of the weight blocks.
        out2 = run(single_buffer_weights=False)

    return (out2[:M].reshape(B, S, D),)


def _reference(x, wo, bo, w1, b1, w2, b2):
    xf = x.astype(jnp.float32)
    h = jnp.einsum("bsd,de->bse", xf, wo.astype(jnp.float32)) + bo.astype(jnp.float32)
    a = jnp.maximum(
        jnp.einsum("bsd,dk->bsk", h, w1.astype(jnp.float32)) + b1.astype(jnp.float32),
        0.0)
    out = (jnp.einsum("bsk,kd->bsd", a, w2.astype(jnp.float32))
           + b2.astype(jnp.float32) + h)
    return (out,)


if __name__ == "__main__":
    # Small shapes consistent with the module (Adapter(size=6, model_dim)).
    B, S, D = 2, 8, 256      # batch, seq, model_dim (small stand-in for 2048)
    SIZE = 6                 # adapter bottleneck size (as in Adapter.__init__)

    key = jax.random.PRNGKey(0)
    kx, kwo, kbo, kw1, kb1, kw2, kb2 = jax.random.split(key, 7)

    # Activations / weights in bf16 (native MXU operand dtype); biases in f32.
    x = jax.random.normal(kx, (B, S, D), dtype=jnp.float32).astype(jnp.bfloat16)
    wo = (jax.random.normal(kwo, (D, D), dtype=jnp.float32)
          * (1.0 / jnp.sqrt(D))).astype(jnp.bfloat16)
    bo = jax.random.normal(kbo, (D,), dtype=jnp.float32) * 0.01
    w1 = (jax.random.normal(kw1, (D, SIZE), dtype=jnp.float32)
          * (1.0 / jnp.sqrt(D))).astype(jnp.bfloat16)
    b1 = jax.random.normal(kb1, (SIZE,), dtype=jnp.float32) * 0.01
    w2 = (jax.random.normal(kw2, (SIZE, D), dtype=jnp.float32)
          * (1.0 / jnp.sqrt(SIZE))).astype(jnp.bfloat16)
    b2 = jax.random.normal(kb2, (D,), dtype=jnp.float32) * 0.01

    out = adaptered_forward(x, wo, bo, w1, b1, w2, b2)
    jax.block_until_ready(out)

    ref = _reference(x, wo, bo, w1, b1, w2, b2)
    assert jnp.allclose(out[0].astype(jnp.float32), ref[0], atol=5e-2, rtol=5e-2), \
        "mismatch vs reference"

    print("KERNEL_OK")
</pallas_src>

<mosaic_0001>
module attributes {stable_mosaic.version = 11 : i64} {
  func.func @_adaptered_kernel(%arg0: i32, %arg1: memref<16x256xbf16, #tpu.memory_space<vmem>>, %arg2: memref<256x256xbf16, #tpu.memory_space<vmem>>, %arg3: memref<1x256xf32, #tpu.memory_space<vmem>>, %arg4: memref<256x128xbf16, #tpu.memory_space<vmem>>, %arg5: memref<1x128xf32, #tpu.memory_space<vmem>>, %arg6: memref<128x256xbf16, #tpu.memory_space<vmem>>, %arg7: memref<1x256xf32, #tpu.memory_space<vmem>>, %arg8: memref<16x256xbf16, #tpu.memory_space<vmem>>) attributes {dimension_semantics = [#tpu.dimension_semantics<parallel>], iteration_bounds = array<i64: 1>, scalar_prefetch = 0 : i64, scratch_operands = 0 : i64, tpu.core_type = #tpu.core_type<tc>, window_params = [{transform_indices = @transform_0, window_bounds = array<i64: 16, 256>}, {pipeline_mode = #tpu.pipeline_mode<synchronous>, transform_indices = @transform_1, window_bounds = array<i64: 256, 256>}, {pipeline_mode = #tpu.pipeline_mode<synchronous>, transform_indices = @transform_2, window_bounds = array<i64: 1, 256>}, {pipeline_mode = #tpu.pipeline_mode<synchronous>, transform_indices = @transform_3, window_bounds = array<i64: 256, 128>}, {pipeline_mode = #tpu.pipeline_mode<synchronous>, transform_indices = @transform_4, window_bounds = array<i64: 1, 128>}, {pipeline_mode = #tpu.pipeline_mode<synchronous>, transform_indices = @transform_5, window_bounds = array<i64: 128, 256>}, {pipeline_mode = #tpu.pipeline_mode<synchronous>, transform_indices = @transform_6, window_bounds = array<i64: 1, 256>}, {transform_indices = @transform_7, window_bounds = array<i64: 16, 256>}]} {
    %c0 = arith.constant 0 : index
    %c0_0 = arith.constant 0 : index
    %0 = vector.load %arg1[%c0, %c0_0] : memref<16x256xbf16, #tpu.memory_space<vmem>>, vector<16x256xbf16>
    %c0_1 = arith.constant 0 : index
    %c0_2 = arith.constant 0 : index
    %1 = vector.load %arg2[%c0_1, %c0_2] : memref<256x256xbf16, #tpu.memory_space<vmem>>, vector<256x256xbf16>
    %cst = arith.constant dense<0.000000e+00> : vector<16x256xf32>
    %2 = tpu.matmul %0, %1, %cst {dimension_numbers = #tpu.dot_dimension_numbers<[1], [0], [0], [1], [0, 0, 1, 1], [], []>} : vector<16x256xbf16>, vector<256x256xbf16>, vector<16x256xf32> -> vector<16x256xf32>
    %c0_3 = arith.constant 0 : index
    %c0_4 = arith.constant 0 : index
    %3 = vector.load %arg3[%c0_3, %c0_4] : memref<1x256xf32, #tpu.memory_space<vmem>>, vector<1x256xf32>
    %4 = vector.broadcast %3 : vector<1x256xf32> to vector<16x256xf32>
    %5 = arith.addf %2, %4 : vector<16x256xf32>
    %6 = arith.truncf %5 : vector<16x256xf32> to vector<16x256xbf16>
    %c0_5 = arith.constant 0 : index
    %c0_6 = arith.constant 0 : index
    %7 = vector.load %arg4[%c0_5, %c0_6] : memref<256x128xbf16, #tpu.memory_space<vmem>>, vector<256x128xbf16>
    %cst_7 = arith.constant dense<0.000000e+00> : vector<16x128xf32>
    %8 = tpu.matmul %6, %7, %cst_7 {dimension_numbers = #tpu.dot_dimension_numbers<[1], [0], [0], [1], [0, 0, 1, 1], [], []>} : vector<16x256xbf16>, vector<256x128xbf16>, vector<16x128xf32> -> vector<16x128xf32>
    %c0_8 = arith.constant 0 : index
    %c0_9 = arith.constant 0 : index
    %9 = vector.load %arg5[%c0_8, %c0_9] : memref<1x128xf32, #tpu.memory_space<vmem>>, vector<1x128xf32>
    %10 = vector.broadcast %9 : vector<1x128xf32> to vector<16x128xf32>
    %11 = arith.addf %8, %10 : vector<16x128xf32>
    %cst_10 = arith.constant 0.000000e+00 : f32
    %12 = vector.broadcast %cst_10 : f32 to vector<16x128xf32>
    %13 = arith.maximumf %11, %12 : vector<16x128xf32>
    %14 = arith.truncf %13 : vector<16x128xf32> to vector<16x128xbf16>
    %c0_11 = arith.constant 0 : index
    %c0_12 = arith.constant 0 : index
    %15 = vector.load %arg6[%c0_11, %c0_12] : memref<128x256xbf16, #tpu.memory_space<vmem>>, vector<128x256xbf16>
    %cst_13 = arith.constant dense<0.000000e+00> : vector<16x256xf32>
    %16 = tpu.matmul %14, %15, %cst_13 {dimension_numbers = #tpu.dot_dimension_numbers<[1], [0], [0], [1], [0, 0, 1, 1], [], []>} : vector<16x128xbf16>, vector<128x256xbf16>, vector<16x256xf32> -> vector<16x256xf32>
    %c0_14 = arith.constant 0 : index
    %c0_15 = arith.constant 0 : index
    %17 = vector.load %arg7[%c0_14, %c0_15] : memref<1x256xf32, #tpu.memory_space<vmem>>, vector<1x256xf32>
    %18 = vector.broadcast %17 : vector<1x256xf32> to vector<16x256xf32>
    %19 = arith.addf %16, %18 : vector<16x256xf32>
    %20 = arith.addf %19, %5 : vector<16x256xf32>
    %21 = arith.truncf %20 : vector<16x256xf32> to vector<16x256xbf16>
    %c0_16 = arith.constant 0 : index
    %c0_17 = arith.constant 0 : index
    %22 = vector.load %arg8[%c0_16, %c0_17] : memref<16x256xbf16, #tpu.memory_space<vmem>>, vector<16x256xbf16>
    tpu.vector_store %arg8[%c0_16, %c0_17], %21 {strides = array<i32>} : memref<16x256xbf16, #tpu.memory_space<vmem>>, vector<16x256xbf16>,
    return
  }
  func.func @transform_0(%arg0: i32) -> (i32, i32) {
    %c0_i32 = arith.constant 0 : i32
    %c0_i32_0 = arith.constant 0 : i32
    return %arg0, %c0_i32 : i32, i32
  }
  func.func @transform_1(%arg0: i32) -> (i32, i32) {
    %c0_i32 = arith.constant 0 : i32
    %c0_i32_0 = arith.constant 0 : i32
    %c0_i32_1 = arith.constant 0 : i32
    return %c0_i32, %c0_i32_0 : i32, i32
  }
  func.func @transform_2(%arg0: i32) -> (i32, i32) {
    %c0_i32 = arith.constant 0 : i32
    %c0_i32_0 = arith.constant 0 : i32
    %c0_i32_1 = arith.constant 0 : i32
    return %c0_i32, %c0_i32_0 : i32, i32
  }
  func.func @transform_3(%arg0: i32) -> (i32, i32) {
    %c0_i32 = arith.constant 0 : i32
    %c0_i32_0 = arith.constant 0 : i32
    %c0_i32_1 = arith.constant 0 : i32
    return %c0_i32, %c0_i32_0 : i32, i32
  }
  func.func @transform_4(%arg0: i32) -> (i32, i32) {
    %c0_i32 = arith.constant 0 : i32
    %c0_i32_0 = arith.constant 0 : i32
    %c0_i32_1 = arith.constant 0 : i32
    return %c0_i32, %c0_i32_0 : i32, i32
  }
  func.func @transform_5(%arg0: i32) -> (i32, i32) {
    %c0_i32 = arith.constant 0 : i32
    %c0_i32_0 = arith.constant 0 : i32
    %c0_i32_1 = arith.constant 0 : i32
    return %c0_i32, %c0_i32_0 : i32, i32
  }
  func.func @transform_6(%arg0: i32) -> (i32, i32) {
    %c0_i32 = arith.constant 0 : i32
    %c0_i32_0 = arith.constant 0 : i32
    %c0_i32_1 = arith.constant 0 : i32
    return %c0_i32, %c0_i32_0 : i32, i32
  }
  func.func @transform_7(%arg0: i32) -> (i32, i32) {
    %c0_i32 = arith.constant 0 : i32
    %c0_i32_0 = arith.constant 0 : i32
    return %arg0, %c0_i32 : i32, i32
  }
}

module attributes {stable_mosaic.version = 11 : i64} {
  func.func @_adaptered_kernel(%arg0: i32, %arg1: memref<16x256xbf16, #tpu.memory_space<vmem>>, %arg2: memref<256x256xbf16, #tpu.memory_space<vmem>>, %arg3: memref<1x256xf32, #tpu.memory_space<vmem>>, %arg4: memref<256x128xbf16, #tpu.memory_space<vmem>>, %arg5: memref<1x128xf32, #tpu.memory_space<vmem>>, %arg6: memref<128x256xbf16, #tpu.memory_space<vmem>>, %arg7: memref<1x256xf32, #tpu.memory_space<vmem>>, %arg8: memref<16x256xbf16, #tpu.memory_space<vmem>>) attributes {dimension_semantics = [#tpu.dimension_semantics<parallel>], iteration_bounds = array<i64: 1>, scalar_prefetch = 0 : i64, scratch_operands = 0 : i64, tpu.core_type = #tpu.core_type<tc>, window_params = [{transform_indices = @transform_0, window_bounds = array<i64: 16, 256>}, {pipeline_mode = #tpu.pipeline_mode<synchronous>, transform_indices = @transform_1, window_bounds = array<i64: 256, 256>}, {pipeline_mode = #tpu.pipeline_mode<synchronous>, transform_indices = @transform_2, window_bounds = array<i64: 1, 256>}, {pipeline_mode = #tpu.pipeline_mode<synchronous>, transform_indices = @transform_3, window_bounds = array<i64: 256, 128>}, {pipeline_mode = #tpu.pipeline_mode<synchronous>, transform_indices = @transform_4, window_bounds = array<i64: 1, 128>}, {pipeline_mode = #tpu.pipeline_mode<synchronous>, transform_indices = @transform_5, window_bounds = array<i64: 128, 256>}, {pipeline_mode = #tpu.pipeline_mode<synchronous>, transform_indices = @transform_6, window_bounds = array<i64: 1, 256>}, {transform_indices = @transform_7, window_bounds = array<i64: 16, 256>}]} {
    %c0 = arith.constant 0 : index
    %c0_0 = arith.constant 0 : index
    %0 = vector.load %arg1[%c0, %c0_0] : memref<16x256xbf16, #tpu.memory_space<vmem>>, vector<16x256xbf16>
    %c0_1 = arith.constant 0 : index
    %c0_2 = arith.constant 0 : index
    %1 = vector.load %arg2[%c0_1, %c0_2] : memref<256x256xbf16, #tpu.memory_space<vmem>>, vector<256x256xbf16>
    %cst = arith.constant dense<0.000000e+00> : vector<16x256xf32>
    %2 = tpu.matmul %0, %1, %cst {dimension_numbers = #tpu.dot_dimension_numbers<[1], [0], [0], [1], [0, 0, 1, 1], [], []>} : vector<16x256xbf16>, vector<256x256xbf16>, vector<16x256xf32> -> vector<16x256xf32>
    %c0_3 = arith.constant 0 : index
    %c0_4 = arith.constant 0 : index
    %3 = vector.load %arg3[%c0_3, %c0_4] : memref<1x256xf32, #tpu.memory_space<vmem>>, vector<1x256xf32>
    %4 = vector.broadcast %3 : vector<1x256xf32> to vector<16x256xf32>
    %5 = arith.addf %2, %4 : vector<16x256xf32>
    %6 = arith.truncf %5 : vector<16x256xf32> to vector<16x256xbf16>
    %c0_5 = arith.constant 0 : index
    %c0_6 = arith.constant 0 : index
    %7 = vector.load %arg4[%c0_5, %c0_6] : memref<256x128xbf16, #tpu.memory_space<vmem>>, vector<256x128xbf16>
    %cst_7 = arith.constant dense<0.000000e+00> : vector<16x128xf32>
    %8 = tpu.matmul %6, %7, %cst_7 {dimension_numbers = #tpu.dot_dimension_numbers<[1], [0], [0], [1], [0, 0, 1, 1], [], []>} : vector<16x256xbf16>, vector<256x128xbf16>, vector<16x128xf32> -> vector<16x128xf32>
    %c0_8 = arith.constant 0 : index
    %c0_9 = arith.constant 0 : index
    %9 = vector.load %arg5[%c0_8, %c0_9] : memref<1x128xf32, #tpu.memory_space<vmem>>, vector<1x128xf32>
    %10 = vector.broadcast %9 : vector<1x128xf32> to vector<16x128xf32>
    %11 = arith.addf %8, %10 : vector<16x128xf32>
    %cst_10 = arith.constant 0.000000e+00 : f32
    %12 = vector.broadcast %cst_10 : f32 to vector<16x128xf32>
    %13 = arith.maximumf %11, %12 : vector<16x128xf32>
    %14 = arith.truncf %13 : vector<16x128xf32> to vector<16x128xbf16>
    %c0_11 = arith.constant 0 : index
    %c0_12 = arith.constant 0 : index
    %15 = vector.load %arg6[%c0_11, %c0_12] : memref<128x256xbf16, #tpu.memory_space<vmem>>, vector<128x256xbf16>
    %cst_13 = arith.constant dense<0.000000e+00> : vector<16x256xf32>
    %16 = tpu.matmul %14, %15, %cst_13 {dimension_numbers = #tpu.dot_dimension_numbers<[1], [0], [0], [1], [0, 0, 1, 1], [], []>} : vector<16x128xbf16>, vector<128x256xbf16>, vector<16x256xf32> -> vector<16x256xf32>
    %c0_14 = arith.constant 0 : index
    %c0_15 = arith.constant 0 : index
    %17 = vector.load %arg7[%c0_14, %c0_15] : memref<1x256xf32, #tpu.memory_space<vmem>>, vector<1x256xf32>
    %18 = vector.broadcast %17 : vector<1x256xf32> to vector<16x256xf32>
    %19 = arith.addf %16, %18 : vector<16x256xf32>
    %20 = arith.addf %19, %5 : vector<16x256xf32>
    %21 = arith.truncf %20 : vector<16x256xf32> to vector<16x256xbf16>
    %c0_16 = arith.constant 0 : index
    %c0_17 = arith.constant 0 : index
    %22 = vector.load %arg8[%c0_16, %c0_17] : memref<16x256xbf16, #tpu.memory_space<vmem>>, vector<16x256xbf16>
    tpu.vector_store %arg8[%c0_16, %c0_17], %21 {strides = array<i32>} : memref<16x256xbf16, #tpu.memory_space<vmem>>, vector<16x256xbf16>,
    return
  }
  func.func @transform_0(%arg0: i32) -> (i32, i32) {
    %c0_i32 = arith.constant 0 : i32
    %c0_i32_0 = arith.constant 0 : i32
    return %arg0, %c0_i32 : i32, i32
  }
  func.func @transform_1(%arg0: i32) -> (i32, i32) {
    %c0_i32 = arith.constant 0 : i32
    %c0_i32_0 = arith.constant 0 : i32
    %c0_i32_1 = arith.constant 0 : i32
    return %c0_i32, %c0_i32_0 : i32, i32
  }
  func.func @transform_2(%arg0: i32) -> (i32, i32) {
    %c0_i32 = arith.constant 0 : i32
    %c0_i32_0 = arith.constant 0 : i32
    %c0_i32_1 = arith.constant 0 : i32
    return %c0_i32, %c0_i32_0 : i32, i32
  }
  func.func @transform_3(%arg0: i32) -> (i32, i32) {
    %c0_i32 = arith.constant 0 : i32
    %c0_i32_0 = arith.constant 0 : i32
    %c0_i32_1 = arith.constant 0 : i32
    return %c0_i32, %c0_i32_0 : i32, i32
  }
  func.func @transform_4(%arg0: i32) -> (i32, i32) {
    %c0_i32 = arith.constant 0 : i32
    %c0_i32_0 = arith.constant 0 : i32
    %c0_i32_1 = arith.constant 0 : i32
    return %c0_i32, %c0_i32_0 : i32, i32
  }
  func.func @transform_5(%arg0: i32) -> (i32, i32) {
    %c0_i32 = arith.constant 0 : i32
    %c0_i32_0 = arith.constant 0 : i32
    %c0_i32_1 = arith.constant 0 : i32
    return %c0_i32, %c0_i32_0 : i32, i32
  }
  func.func @transform_6(%arg0: i32) -> (i32, i32) {
    %c0_i32 = arith.constant 0 : i32
    %c0_i32_0 = arith.constant 0 : i32
    %c0_i32_1 = arith.constant 0 : i32
    return %c0_i32, %c0_i32_0 : i32, i32
  }
  func.func @transform_7(%arg0: i32) -> (i32, i32) {
    %c0_i32 = arith.constant 0 : i32
    %c0_i32_0 = arith.constant 0 : i32
    return %arg0, %c0_i32 : i32, i32
  }
}

</mosaic_0001>

<llo_original>
// kernel: tpu_custom_call.1
$region0: #{tpu_custom_call.1}
  #allocation0 [shape = 'u32[]', space=smem, size = 0x4, offset = 0x4, fixed_abs, tag = 'smem constant byte address 0x4 - core index']
  #allocation1 [shape = 'u32[72,128]{1,0:T(1,128)}', space=vmem, size = 0x9000, scoped, tag = 'internal scratch']
  %s0 = inlined_call_operand.hbm [shape: bf16[16,256], index: 0, kind: input, shape index: {}]
  %s1 = inlined_call_operand.hbm [shape: bf16[256,256], index: 1, kind: input, shape index: {}]
  %s2 = inlined_call_operand.hbm [shape: f32[1,256], index: 2, kind: input, shape index: {}]
  %s3 = inlined_call_operand.hbm [shape: bf16[256,128], index: 3, kind: input, shape index: {}]
  %s4 = inlined_call_operand.vmem [shape: f32[1,128], index: 4, kind: input, shape index: {}]
  %s5 = inlined_call_operand.hbm [shape: bf16[128,256], index: 5, kind: input, shape index: {}]
  %s6 = inlined_call_operand.vmem [shape: f32[1,256], index: 6, kind: input, shape index: {}]
  %s7 = inlined_call_operand.hbm [shape: bf16[16,256], index: 7, kind: output, shape index: {}]
  %s8 = sld [smem:[#allocation0]]
  $region58: #{tpu_custom_call.1} parent=0
    _
  %s10 = ssub.s32 1, %s8
  %s11 = scalar_select 0, %s10, %s8
  $region1: #{tpu_custom_call.1} parent=0
    #allocation2 [shape = 'u8[8192]{0}', space=vmem, size = 0x2000, scoped, tag = 'input window, operand 0, single buffered']
    #allocation3 [shape = 's32[1]{0}', space=sflag, size = 0x4, scoped, tag = 'scoped memory for tpu_custom_call.1']
    #allocation4 [shape = 's32[1]{0}', space=sflag, size = 0x4, scoped, tag = 'scoped memory for tpu_custom_call.1']
    #allocation5 [shape = 'u8[131072]{0}', space=vmem, size = 0x20000, scoped, tag = 'input window, operand 1, single buffered']
    #allocation6 [shape = 's32[1]{0}', space=sflag, size = 0x4, scoped, tag = 'scoped memory for tpu_custom_call.1']
    #allocation7 [shape = 'u8[1024]{0}', space=vmem, size = 0x400, scoped, tag = 'input window, operand 2, single buffered']
    #allocation8 [shape = 'u8[65536]{0}', space=vmem, size = 0x10000, scoped, tag = 'input window, operand 3, single buffered']
    #allocation9 [shape = 's32[1]{0}', space=sflag, size = 0x4, scoped, tag = 'scoped memory for tpu_custom_call.1']
    #allocation10 [shape = 'u8[65536]{0}', space=vmem, size = 0x10000, scoped, tag = 'input window, operand 5, single buffered']
    #allocation11 [shape = 'u8[8192]{0}', space=vmem, size = 0x2000, scoped, tag = 'output window, operand 0, single buffered']
    %12 = vsyncpa [#allocation3], 0
    %13 = vsyncpa [#allocation6], 0
    %14 = vsyncpa [#allocation9], 0
    %15 = vsyncpa [#allocation4], 0
    // Predicated region
    $region2: #{tpu_custom_call.1} parent=1 // pred_check
      _
    $region3: #{tpu_custom_call.1} parent=1 // pred_check_branch
      %17 = sbr.rel (0) target = $region5
    $region4: #{tpu_custom_call.1} parent=1 // pred_region
      %19 = vsyncadd [#allocation3], 0
      %s20 = sshll.u32 %s0, 4
      %s21 = int_to_ptr.hbm [resolvable:$true] %s20
      %s22 = sshll.u32 [#allocation2], 4
      %s23 = int_to_ptr.vmem [resolvable:$true] %s22
      %28 = dma.hbm_to_vmem [thread:$0]  %s21, 256, %s23, [#allocation3], 128, 128, 8
    $region5: #{tpu_custom_call.1} parent=1 // pred_fallthru
      _
    // Predicated region
    $region6: #{tpu_custom_call.1} parent=1 // pred_check
      _
    $region7: #{tpu_custom_call.1} parent=1 // pred_check_branch
      %30 = sbr.rel (0) target = $region9
    $region8: #{tpu_custom_call.1} parent=1 // pred_region
      %32 = vsyncadd [#allocation6], 0
      %s33 = sshll.u32 %s1, 4
      %s34 = int_to_ptr.hbm [resolvable:$true] %s33
      %s35 = sshll.u32 [#allocation5], 4
      %s36 = int_to_ptr.vmem [resolvable:$true] %s35
      %41 = dma.hbm_to_vmem [thread:$0]  %s34, 4096, %s36, [#allocation6], 128, 128, 8
    $region9: #{tpu_custom_call.1} parent=1 // pred_fallthru
      _
    // Predicated region
    $region10: #{tpu_custom_call.1} parent=1 // pred_check
      _
    $region11: #{tpu_custom_call.1} parent=1 // pred_check_branch
      %43 = sbr.rel (0) target = $region13
    $region12: #{tpu_custom_call.1} parent=1 // pred_region
      %45 = vsyncadd [#allocation6], 0
      %s47 = sshll.u32 %s2, 4
      %s48 = int_to_ptr.hbm [resolvable:$true] %s47
      %s49 = sshll.u32 [#allocation7], 4
      %s50 = int_to_ptr.vmem [resolvable:$true] %s49
      %52 = dma.hbm_to_vmem [thread:$0]  %s48, 32, %s50, [#allocation6]
    $region13: #{tpu_custom_call.1} parent=1 // pred_fallthru
      _
    // Predicated region
    $region14: #{tpu_custom_call.1} parent=1 // pred_check
      _
    $region15: #{tpu_custom_call.1} parent=1 // pred_check_branch
      %54 = sbr.rel (0) target = $region17
    $region16: #{tpu_custom_call.1} parent=1 // pred_region
      %56 = vsyncadd [#allocation9], 0
      %s57 = sshll.u32 %s3, 4
      %s58 = int_to_ptr.hbm [resolvable:$true] %s57
      %s59 = sshll.u32 [#allocation8], 4
      %s60 = int_to_ptr.vmem [resolvable:$true] %s59
      %65 = dma.hbm_to_vmem [thread:$0]  %s58, 2048, %s60, [#allocation9], 64, 64, 4
    $region17: #{tpu_custom_call.1} parent=1 // pred_fallthru
      _
    // Predicated region
    $region18: #{tpu_custom_call.1} parent=1 // pred_check
      _
    $region19: #{tpu_custom_call.1} parent=1 // pred_check_branch
      %67 = sbr.rel (0) target = $region21
    $region20: #{tpu_custom_call.1} parent=1 // pred_region
      _
    $region21: #{tpu_custom_call.1} parent=1 // pred_fallthru
      _
    // Predicated region
    $region22: #{tpu_custom_call.1} parent=1 // pred_check
      _
    $region23: #{tpu_custom_call.1} parent=1 // pred_check_branch
      %69 = sbr.rel (0) target = $region25
    $region24: #{tpu_custom_call.1} parent=1 // pred_region
      %71 = vsyncadd [#allocation9], 0
      %s72 = sshll.u32 %s5, 4
      %s73 = int_to_ptr.hbm [resolvable:$true] %s72
      %s74 = sshll.u32 [#allocation10], 4
      %s75 = int_to_ptr.vmem [resolvable:$true] %s74
      %80 = dma.hbm_to_vmem [thread:$0]  %s73, 2048, %s75, [#allocation9], 128, 128, 8
    $region25: #{tpu_custom_call.1} parent=1 // pred_fallthru
      _
    // Predicated region
    $region26: #{tpu_custom_call.1} parent=1 // pred_check
      _
    $region27: #{tpu_custom_call.1} parent=1 // pred_check_branch
      %82 = sbr.rel (0) target = $region29
    $region28: #{tpu_custom_call.1} parent=1 // pred_region
      _
    $region29: #{tpu_custom_call.1} parent=1 // pred_fallthru
      _
    // Predicated region
    $region30: #{tpu_custom_call.1} parent=1 // pred_check
      _
    $region31: #{tpu_custom_call.1} parent=1 // pred_check_branch
      %84 = sbr.rel (0) target = $region33
    $region32: #{tpu_custom_call.1} parent=1 // pred_region
      %86 = dma.done [#allocation3], 256
    $region33: #{tpu_custom_call.1} parent=1 // pred_fallthru
      _
    // Predicated region
    $region34: #{tpu_custom_call.1} parent=1 // pred_check
      _
    $region35: #{tpu_custom_call.1} parent=1 // pred_check_branch
      %88 = sbr.rel (0) target = $region37
    $region36: #{tpu_custom_call.1} parent=1 // pred_region
      %90 = dma.done [#allocation6], 4096
    $region37: #{tpu_custom_call.1} parent=1 // pred_fallthru
      _
    // Predicated region
    $region38: #{tpu_custom_call.1} parent=1 // pred_check
      _
    $region39: #{tpu_custom_call.1} parent=1 // pred_check_branch
      %92 = sbr.rel (0) target = $region41
    $region40: #{tpu_custom_call.1} parent=1 // pred_region
      %94 = dma.done [#allocation6], 32
    $region41: #{tpu_custom_call.1} parent=1 // pred_fallthru
      _
    // Predicated region
    $region42: #{tpu_custom_call.1} parent=1 // pred_check
      _
    $region43: #{tpu_custom_call.1} parent=1 // pred_check_branch
      %96 = sbr.rel (0) target = $region45
    $region44: #{tpu_custom_call.1} parent=1 // pred_region
      %98 = dma.done [#allocation9], 2048
    $region45: #{tpu_custom_call.1} parent=1 // pred_fallthru
      _
    // Predicated region
    $region46: #{tpu_custom_call.1} parent=1 // pred_check
      _
    $region47: #{tpu_custom_call.1} parent=1 // pred_check_branch
      %100 = sbr.rel (0) target = $region49
    $region48: #{tpu_custom_call.1} parent=1 // pred_region
      %102 = dma.done [#allocation9], 2048
    $region49: #{tpu_custom_call.1} parent=1 // pred_fallthru
      _
    %v103 = vld [vmem:[#allocation2] sm:$0xff]
    %v104 = vld [vmem:[#allocation2 + $0x8] sm:$0xff]
    %v105 = vld [vmem:[#allocation5] sm:$0xff]
    %v106 = vld [vmem:[#allocation5 + $0x8] sm:$0xff]
    %v107 = vld [vmem:[#allocation5 + $0x10] sm:$0xff]
    %v108 = vld [vmem:[#allocation5 + $0x18] sm:$0xff]
    %v109 = vld [vmem:[#allocation5 + $0x20] sm:$0xff]
    %v110 = vld [vmem:[#allocation5 + $0x28] sm:$0xff]
    %v111 = vld [vmem:[#allocation5 + $0x30] sm:$0xff]
    %v112 = vld [vmem:[#allocation5 + $0x38] sm:$0xff]
    %v113 = vld [vmem:[#allocation5 + $0x40] sm:$0xff]
    %v114 = vld [vmem:[#allocation5 + $0x48] sm:$0xff]
    %v115 = vld [vmem:[#allocation5 + $0x50] sm:$0xff]
    %v116 = vld [vmem:[#allocation5 + $0x58] sm:$0xff]
    %v117 = vld [vmem:[#allocation5 + $0x60] sm:$0xff]
    %v118 = vld [vmem:[#allocation5 + $0x68] sm:$0xff]
    %v119 = vld [vmem:[#allocation5 + $0x70] sm:$0xff]
    %v120 = vld [vmem:[#allocation5 + $0x78] sm:$0xff]
    %v121 = vld [vmem:[#allocation5 + $0x80] sm:$0xff]
    %v122 = vld [vmem:[#allocation5 + $0x88] sm:$0xff]
    %v123 = vld [vmem:[#allocation5 + $0x90] sm:$0xff]
    %v124 = vld [vmem:[#allocation5 + $0x98] sm:$0xff]
    %v125 = vld [vmem:[#allocation5 + $0xa0] sm:$0xff]
    %v126 = vld [vmem:[#allocation5 + $0xa8] sm:$0xff]
    %v127 = vld [vmem:[#allocation5 + $0xb0] sm:$0xff]
    %v128 = vld [vmem:[#allocation5 + $0xb8] sm:$0xff]
    %v129 = vld [vmem:[#allocation5 + $0xc0] sm:$0xff]
    %v130 = vld [vmem:[#allocation5 + $0xc8] sm:$0xff]
    %v131 = vld [vmem:[#allocation5 + $0xd0] sm:$0xff]
    %v132 = vld [vmem:[#allocation5 + $0xd8] sm:$0xff]
    %v133 = vld [vmem:[#allocation5 + $0xe0] sm:$0xff]
    %v134 = vld [vmem:[#allocation5 + $0xe8] sm:$0xff]
    %v135 = vld [vmem:[#allocation5 + $0xf0] sm:$0xff]
    %v136 = vld [vmem:[#allocation5 + $0xf8] sm:$0xff]
    %v137 = vld [vmem:[#allocation7] sm:$0x3]
    %v139 = vperm.slane %v137, 0
    %v140 = vperm.slane %v137, 1
    %v145 = vunpack.c.l.b16 %v103
    %v146 = vunpack.c.h.b16 %v103
    %v147 = vunpack.c.l.b16 %v104
    %v148 = vunpack.c.h.b16 %v104
    %v149 = vpack.c.b16 %v147, %v145
    %v150 = vpack.c.b16 %v148, %v146
    %v185 = vunpack.c.l.b16 %v105
    %v186 = vunpack.c.h.b16 %v105
    %v187 = vunpack.c.l.b16 %v106
    %v188 = vunpack.c.h.b16 %v106
    %v189 = vunpack.c.l.b16 %v107
    %v190 = vunpack.c.h.b16 %v107
    %v191 = vunpack.c.l.b16 %v108
    %v192 = vunpack.c.h.b16 %v108
    %v193 = vunpack.c.l.b16 %v109
    %v194 = vunpack.c.h.b16 %v109
    %v195 = vunpack.c.l.b16 %v110
    %v196 = vunpack.c.h.b16 %v110
    %v197 = vunpack.c.l.b16 %v111
    %v198 = vunpack.c.h.b16 %v111
    %v199 = vunpack.c.l.b16 %v112
    %v200 = vunpack.c.h.b16 %v112
    %v201 = vunpack.c.l.b16 %v113
    %v202 = vunpack.c.h.b16 %v113
    %v203 = vunpack.c.l.b16 %v114
    %v204 = vunpack.c.h.b16 %v114
    %v205 = vunpack.c.l.b16 %v115
    %v206 = vunpack.c.h.b16 %v115
    %v207 = vunpack.c.l.b16 %v116
    %v208 = vunpack.c.h.b16 %v116
    %v209 = vunpack.c.l.b16 %v117
    %v210 = vunpack.c.h.b16 %v117
    %v211 = vunpack.c.l.b16 %v118
    %v212 = vunpack.c.h.b16 %v118
    %v213 = vunpack.c.l.b16 %v119
    %v214 = vunpack.c.h.b16 %v119
    %v215 = vunpack.c.l.b16 %v120
    %v216 = vunpack.c.h.b16 %v120
    %v217 = vunpack.c.l.b16 %v121
    %v218 = vunpack.c.h.b16 %v121
    %v219 = vunpack.c.l.b16 %v122
    %v220 = vunpack.c.h.b16 %v122
    %v221 = vunpack.c.l.b16 %v123
    %v222 = vunpack.c.h.b16 %v123
    %v223 = vunpack.c.l.b16 %v124
    %v224 = vunpack.c.h.b16 %v124
    %v225 = vunpack.c.l.b16 %v125
    %v226 = vunpack.c.h.b16 %v125
    %v227 = vunpack.c.l.b16 %v126
    %v228 = vunpack.c.h.b16 %v126
    %v229 = vunpack.c.l.b16 %v127
    %v230 = vunpack.c.h.b16 %v127
    %v231 = vunpack.c.l.b16 %v128
    %v232 = vunpack.c.h.b16 %v128
    %v233 = vunpack.c.l.b16 %v129
    %v234 = vunpack.c.h.b16 %v129
    %v235 = vunpack.c.l.b16 %v130
    %v236 = vunpack.c.h.b16 %v130
    %v237 = vunpack.c.l.b16 %v131
    %v238 = vunpack.c.h.b16 %v131
    %v239 = vunpack.c.l.b16 %v132
    %v240 = vunpack.c.h.b16 %v132
    %v241 = vunpack.c.l.b16 %v133
    %v242 = vunpack.c.h.b16 %v133
    %v243 = vunpack.c.l.b16 %v134
    %v244 = vunpack.c.h.b16 %v134
    %v245 = vunpack.c.l.b16 %v135
    %v246 = vunpack.c.h.b16 %v135
    %v247 = vunpack.c.l.b16 %v136
    %v248 = vunpack.c.h.b16 %v136
    %v249 = vpack.c.b16 %v187, %v185
    %v250 = vpack.c.b16 %v188, %v186
    %v251 = vpack.c.b16 %v191, %v189
    %v252 = vpack.c.b16 %v192, %v190
    %v253 = vpack.c.b16 %v195, %v193
    %v254 = vpack.c.b16 %v196, %v194
    %v255 = vpack.c.b16 %v199, %v197
    %v256 = vpack.c.b16 %v200, %v198
    %v257 = vpack.c.b16 %v203, %v201
    %v258 = vpack.c.b16 %v204, %v202
    %v259 = vpack.c.b16 %v207, %v205
    %v260 = vpack.c.b16 %v208, %v206
    %v261 = vpack.c.b16 %v211, %v209
    %v262 = vpack.c.b16 %v212, %v210
    %v263 = vpack.c.b16 %v215, %v213
    %v264 = vpack.c.b16 %v216, %v214
    %v265 = vpack.c.b16 %v219, %v217
    %v266 = vpack.c.b16 %v220, %v218
    %v267 = vpack.c.b16 %v223, %v221
    %v268 = vpack.c.b16 %v224, %v222
    %v269 = vpack.c.b16 %v227, %v225
    %v270 = vpack.c.b16 %v228, %v226
    %v271 = vpack.c.b16 %v231, %v229
    %v272 = vpack.c.b16 %v232, %v230
    %v273 = vpack.c.b16 %v235, %v233
    %v274 = vpack.c.b16 %v236, %v234
    %v275 = vpack.c.b16 %v239, %v237
    %v276 = vpack.c.b16 %v240, %v238
    %v277 = vpack.c.b16 %v243, %v241
    %v278 = vpack.c.b16 %v244, %v242
    %v279 = vpack.c.b16 %v247, %v245
    %v280 = vpack.c.b16 %v248, %v246
    %313 = vmatpush.bf16.msra.mxu0 %v263
    %314 = vmatpush.bf16.msra.mxu0 %v261
    %315 = vmatpush.bf16.msra.mxu0 %v259
    %316 = vmatpush.bf16.msra.mxu0 %v257
    %317 = vmatpush.bf16.msra.mxu0 %v255
    %318 = vmatpush.bf16.msra.mxu0 %v253
    %319 = vmatpush.bf16.msra.mxu0 %v251
    %320 = vmatpush.bf16.msra.mxu0 %v249
    %321 = vmatmul.bf16.gmra.mxu0 %v149
    %v322 = vpop.f32.mrf.mxu0
    %v323 = vadd.f32 %v139, %v322
    %v324 = vpop.f32.mrf.mxu0
    %v325 = vadd.f32 %v139, %v324
    %326 = vdwg.mxu0
    %327 = vmatpush.bf16.msra.mxu0 %v279
    %328 = vmatpush.bf16.msra.mxu0 %v277
    %329 = vmatpush.bf16.msra.mxu0 %v275
    %330 = vmatpush.bf16.msra.mxu0 %v273
    %331 = vmatpush.bf16.msra.mxu0 %v271
    %332 = vmatpush.bf16.msra.mxu0 %v269
    %333 = vmatpush.bf16.msra.mxu0 %v267
    %334 = vmatpush.bf16.msra.mxu0 %v265
    %335 = vmatmul.bf16.gmra.mxu0 %v150
    %v336 = vpop.f32.mrf.mxu0
    %v337 = vadd.f32 %v323, %v336
    %v338 = vpop.f32.mrf.mxu0
    %v339 = vadd.f32 %v325, %v338
    %340 = vdwg.mxu0
    %341 = vmatpush.bf16.msra.mxu0 %v264
    %342 = vmatpush.bf16.msra.mxu0 %v262
    %343 = vmatpush.bf16.msra.mxu0 %v260
    %344 = vmatpush.bf16.msra.mxu0 %v258
    %345 = vmatpush.bf16.msra.mxu0 %v256
    %346 = vmatpush.bf16.msra.mxu0 %v254
    %347 = vmatpush.bf16.msra.mxu0 %v252
    %348 = vmatpush.bf16.msra.mxu0 %v250
    %349 = vmatmul.bf16.gmra.mxu0 %v149
    %v350 = vpop.f32.mrf.mxu0
    %v351 = vadd.f32 %v140, %v350
    %v352 = vpop.f32.mrf.mxu0
    %v353 = vadd.f32 %v140, %v352
    %354 = vdwg.mxu0
    %355 = vmatpush.bf16.msra.mxu0 %v280
    %356 = vmatpush.bf16.msra.mxu0 %v278
    %357 = vmatpush.bf16.msra.mxu0 %v276
    %358 = vmatpush.bf16.msra.mxu0 %v274
    %359 = vmatpush.bf16.msra.mxu0 %v272
    %360 = vmatpush.bf16.msra.mxu0 %v270
    %361 = vmatpush.bf16.msra.mxu0 %v268
    %362 = vmatpush.bf16.msra.mxu0 %v266
    %363 = vmatmul.bf16.gmra.mxu0 %v150
    %v364 = vpop.f32.mrf.mxu0
    %v365 = vadd.f32 %v351, %v364
    %v366 = vpop.f32.mrf.mxu0
    %v367 = vadd.f32 %v353, %v366
    %368 = vdwg.mxu0
    %v369 = vpack.c.bf16 %v339, %v337
    %v370 = vpack.c.bf16 %v367, %v365
    %v371 = vld [vmem:[#allocation8] sm:$0xf]
    %v372 = vld [vmem:[#allocation8 + $0x4] sm:$0xf]
    %v373 = vld [vmem:[#allocation8 + $0x8] sm:$0xf]
    %v374 = vld [vmem:[#allocation8 + $0xc] sm:$0xf]
    %v375 = vld [vmem:[#allocation8 + $0x10] sm:$0xf]
    %v376 = vld [vmem:[#allocation8 + $0x14] sm:$0xf]
    %v377 = vld [vmem:[#allocation8 + $0x18] sm:$0xf]
    %v378 = vld [vmem:[#allocation8 + $0x1c] sm:$0xf]
    %v379 = vld [vmem:[#allocation8 + $0x20] sm:$0xf]
    %v380 = vld [vmem:[#allocation8 + $0x24] sm:$0xf]
    %v381 = vld [vmem:[#allocation8 + $0x28] sm:$0xf]
    %v382 = vld [vmem:[#allocation8 + $0x2c] sm:$0xf]
    %v383 = vld [vmem:[#allocation8 + $0x30] sm:$0xf]
    %v384 = vld [vmem:[#allocation8 + $0x34] sm:$0xf]
    %v385 = vld [vmem:[#allocation8 + $0x38] sm:$0xf]
    %v386 = vld [vmem:[#allocation8 + $0x3c] sm:$0xf]
    %v387 = vld [vmem:[#allocation8 + $0x40] sm:$0xf]
    %v388 = vld [vmem:[#allocation8 + $0x44] sm:$0xf]
    %v389 = vld [vmem:[#allocation8 + $0x48] sm:$0xf]
    %v390 = vld [vmem:[#allocation8 + $0x4c] sm:$0xf]
    %v391 = vld [vmem:[#allocation8 + $0x50] sm:$0xf]
    %v392 = vld [vmem:[#allocation8 + $0x54] sm:$0xf]
    %v393 = vld [vmem:[#allocation8 + $0x58] sm:$0xf]
    %v394 = vld [vmem:[#allocation8 + $0x5c] sm:$0xf]
    %v395 = vld [vmem:[#allocation8 + $0x60] sm:$0xf]
    %v396 = vld [vmem:[#allocation8 + $0x64] sm:$0xf]
    %v397 = vld [vmem:[#allocation8 + $0x68] sm:$0xf]
    %v398 = vld [vmem:[#allocation8 + $0x6c] sm:$0xf]
    %v399 = vld [vmem:[#allocation8 + $0x70] sm:$0xf]
    %v400 = vld [vmem:[#allocation8 + $0x74] sm:$0xf]
    %v401 = vld [vmem:[#allocation8 + $0x78] sm:$0xf]
    %v402 = vld [vmem:[#allocation8 + $0x7c] sm:$0xf]
    %v403 = vld [vmem:[%s4] sm:$0x1]
    %v405 = vperm.slane %v403, 0
    %v439 = vunpack.c.l.b16 %v371
    %v440 = vunpack.c.l.b16 %v372
    %v441 = vunpack.c.l.b16 %v373
    %v442 = vunpack.c.l.b16 %v374
    %v443 = vunpack.c.l.b16 %v375
    %v444 = vunpack.c.l.b16 %v376
    %v445 = vunpack.c.l.b16 %v377
    %v446 = vunpack.c.l.b16 %v378
    %v447 = vunpack.c.l.b16 %v379
    %v448 = vunpack.c.l.b16 %v380
    %v449 = vunpack.c.l.b16 %v381
    %v450 = vunpack.c.l.b16 %v382
    %v451 = vunpack.c.l.b16 %v383
    %v452 = vunpack.c.l.b16 %v384
    %v453 = vunpack.c.l.b16 %v385
    %v454 = vunpack.c.l.b16 %v386
    %v455 = vunpack.c.l.b16 %v387
    %v456 = vunpack.c.l.b16 %v388
    %v457 = vunpack.c.l.b16 %v389
    %v458 = vunpack.c.l.b16 %v390
    %v459 = vunpack.c.l.b16 %v391
    %v460 = vunpack.c.l.b16 %v392
    %v461 = vunpack.c.l.b16 %v393
    %v462 = vunpack.c.l.b16 %v394
    %v463 = vunpack.c.l.b16 %v395
    %v464 = vunpack.c.l.b16 %v396
    %v465 = vunpack.c.l.b16 %v397
    %v466 = vunpack.c.l.b16 %v398
    %v467 = vunpack.c.l.b16 %v399
    %v468 = vunpack.c.l.b16 %v400
    %v469 = vunpack.c.l.b16 %v401
    %v470 = vunpack.c.l.b16 %v402
    %v471 = vpack.c.b16 %v440, %v439
    %v472 = vpack.c.b16 %v442, %v441
    %v473 = vpack.c.b16 %v444, %v443
    %v474 = vpack.c.b16 %v446, %v445
    %v475 = vpack.c.b16 %v448, %v447
    %v476 = vpack.c.b16 %v450, %v449
    %v477 = vpack.c.b16 %v452, %v451
    %v478 = vpack.c.b16 %v454, %v453
    %v479 = vpack.c.b16 %v456, %v455
    %v480 = vpack.c.b16 %v458, %v457
    %v481 = vpack.c.b16 %v460, %v459
    %v482 = vpack.c.b16 %v462, %v461
    %v483 = vpack.c.b16 %v464, %v463
    %v484 = vpack.c.b16 %v466, %v465
    %v485 = vpack.c.b16 %v468, %v467
    %v486 = vpack.c.b16 %v470, %v469
    %503 = vmatpush.bf16.msra.mxu0 %v478
    %504 = vmatpush.bf16.msra.mxu0 %v477
    %505 = vmatpush.bf16.msra.mxu0 %v476
    %506 = vmatpush.bf16.msra.mxu0 %v475
    %507 = vmatpush.bf16.msra.mxu0 %v474
    %508 = vmatpush.bf16.msra.mxu0 %v473
    %509 = vmatpush.bf16.msra.mxu0 %v472
    %510 = vmatpush.bf16.msra.mxu0 %v471
    %511 = vmatmul.bf16.gmra.mxu0 %v369
    %v512 = vpop.f32.mrf.mxu0
    %v513 = vadd.f32 %v405, %v512
    %v514 = vpop.f32.mrf.mxu0
    %v515 = vadd.f32 %v405, %v514
    %516 = vdwg.mxu0
    %517 = vmatpush.bf16.msra.mxu0 %v486
    %518 = vmatpush.bf16.msra.mxu0 %v485
    %519 = vmatpush.bf16.msra.mxu0 %v484
    %520 = vmatpush.bf16.msra.mxu0 %v483
    %521 = vmatpush.bf16.msra.mxu0 %v482
    %522 = vmatpush.bf16.msra.mxu0 %v481
    %523 = vmatpush.bf16.msra.mxu0 %v480
    %524 = vmatpush.bf16.msra.mxu0 %v479
    %525 = vmatmul.bf16.gmra.mxu0 %v370
    %v526 = vpop.f32.mrf.mxu0
    %v527 = vadd.f32 %v513, %v526
    %v528 = vpop.f32.mrf.mxu0
    %v529 = vadd.f32 %v515, %v528
    %530 = vdwg.mxu0
    %v531 = vmax.f32 %v527, 0.0
    %v532 = vmax.f32 %v529, 0.0
    %v533 = vpack.c.bf16 %v532, %v531
    %v534 = vld [vmem:[#allocation10] sm:$0xff]
    %v535 = vld [vmem:[#allocation10 + $0x8] sm:$0xff]
    %v536 = vld [vmem:[#allocation10 + $0x10] sm:$0xff]
    %v537 = vld [vmem:[#allocation10 + $0x18] sm:$0xff]
    %v538 = vld [vmem:[#allocation10 + $0x20] sm:$0xff]
    %v539 = vld [vmem:[#allocation10 + $0x28] sm:$0xff]
    %v540 = vld [vmem:[#allocation10 + $0x30] sm:$0xff]
    %v541 = vld [vmem:[#allocation10 + $0x38] sm:$0xff]
    %v542 = vld [vmem:[#allocation10 + $0x40] sm:$0xff]
    %v543 = vld [vmem:[#allocation10 + $0x48] sm:$0xff]
    %v544 = vld [vmem:[#allocation10 + $0x50] sm:$0xff]
    %v545 = vld [vmem:[#allocation10 + $0x58] sm:$0xff]
    %v546 = vld [vmem:[#allocation10 + $0x60] sm:$0xff]
    %v547 = vld [vmem:[#allocation10 + $0x68] sm:$0xff]
    %v548 = vld [vmem:[#allocation10 + $0x70] sm:$0xff]
    %v549 = vld [vmem:[#allocation10 + $0x78] sm:$0xff]
    %v550 = vld [vmem:[%s6] sm:$0x3]
    %v552 = vperm.slane %v550, 0
    %v553 = vperm.slane %v550, 1
    %v572 = vunpack.c.l.b16 %v534
    %v573 = vunpack.c.h.b16 %v534
    %v574 = vunpack.c.l.b16 %v535
    %v575 = vunpack.c.h.b16 %v535
    %v576 = vunpack.c.l.b16 %v536
    %v577 = vunpack.c.h.b16 %v536
    %v578 = vunpack.c.l.b16 %v537
    %v579 = vunpack.c.h.b16 %v537
    %v580 = vunpack.c.l.b16 %v538
    %v581 = vunpack.c.h.b16 %v538
    %v582 = vunpack.c.l.b16 %v539
    %v583 = vunpack.c.h.b16 %v539
    %v584 = vunpack.c.l.b16 %v540
    %v585 = vunpack.c.h.b16 %v540
    %v586 = vunpack.c.l.b16 %v541
    %v587 = vunpack.c.h.b16 %v541
    %v588 = vunpack.c.l.b16 %v542
    %v589 = vunpack.c.h.b16 %v542
    %v590 = vunpack.c.l.b16 %v543
    %v591 = vunpack.c.h.b16 %v543
    %v592 = vunpack.c.l.b16 %v544
    %v593 = vunpack.c.h.b16 %v544
    %v594 = vunpack.c.l.b16 %v545
    %v595 = vunpack.c.h.b16 %v545
    %v596 = vunpack.c.l.b16 %v546
    %v597 = vunpack.c.h.b16 %v546
    %v598 = vunpack.c.l.b16 %v547
    %v599 = vunpack.c.h.b16 %v547
    %v600 = vunpack.c.l.b16 %v548
    %v601 = vunpack.c.h.b16 %v548
    %v602 = vunpack.c.l.b16 %v549
    %v603 = vunpack.c.h.b16 %v549
    %v604 = vpack.c.b16 %v574, %v572
    %v605 = vpack.c.b16 %v575, %v573
    %v606 = vpack.c.b16 %v578, %v576
    %v607 = vpack.c.b16 %v579, %v577
    %v608 = vpack.c.b16 %v582, %v580
    %v609 = vpack.c.b16 %v583, %v581
    %v610 = vpack.c.b16 %v586, %v584
    %v611 = vpack.c.b16 %v587, %v585
    %v612 = vpack.c.b16 %v590, %v588
    %v613 = vpack.c.b16 %v591, %v589
    %v614 = vpack.c.b16 %v594, %v592
    %v615 = vpack.c.b16 %v595, %v593
    %v616 = vpack.c.b16 %v598, %v596
    %v617 = vpack.c.b16 %v599, %v597
    %v618 = vpack.c.b16 %v602, %v600
    %v619 = vpack.c.b16 %v603, %v601
    %636 = vmatpush.bf16.msra.mxu0 %v618
    %637 = vmatpush.bf16.msra.mxu0 %v616
    %638 = vmatpush.bf16.msra.mxu0 %v614
    %639 = vmatpush.bf16.msra.mxu0 %v612
    %640 = vmatpush.bf16.msra.mxu0 %v610
    %641 = vmatpush.bf16.msra.mxu0 %v608
    %642 = vmatpush.bf16.msra.mxu0 %v606
    %643 = vmatpush.bf16.msra.mxu0 %v604
    %644 = vmatmul.bf16.gmra.mxu0 %v533
    %v645 = vpop.f32.mrf.mxu0
    %v646 = vadd.f32 %v552, %v645
    %v647 = vpop.f32.mrf.mxu0
    %v648 = vadd.f32 %v552, %v647
    %649 = vdwg.mxu0
    %650 = vmatpush.bf16.msra.mxu0 %v619
    %651 = vmatpush.bf16.msra.mxu0 %v617
    %652 = vmatpush.bf16.msra.mxu0 %v615
    %653 = vmatpush.bf16.msra.mxu0 %v613
    %654 = vmatpush.bf16.msra.mxu0 %v611
    %655 = vmatpush.bf16.msra.mxu0 %v609
    %656 = vmatpush.bf16.msra.mxu0 %v607
    %657 = vmatpush.bf16.msra.mxu0 %v605
    %658 = vmatmul.bf16.gmra.mxu0 %v533
    %v659 = vpop.f32.mrf.mxu0
    %v660 = vadd.f32 %v553, %v659
    %v661 = vpop.f32.mrf.mxu0
    %v662 = vadd.f32 %v553, %v661
    %663 = vdwg.mxu0
    %v664 = vadd.f32 %v646, %v337
    %v665 = vadd.f32 %v660, %v365
    %v666 = vadd.f32 %v648, %v339
    %v667 = vadd.f32 %v662, %v367
    %v668 = vpack.c.bf16 %v665, %v664
    %v669 = vpack.c.bf16 %v667, %v666
    %670 = vst [vmem:[#allocation11] sm:$0xff] %v668
    %671 = vst [vmem:[#allocation11 + $0x8] sm:$0xff] %v669
    // Predicated region
    $region50: #{tpu_custom_call.1} parent=1 // pred_check
      _
    $region51: #{tpu_custom_call.1} parent=1 // pred_check_branch
      %673 = sbr.rel (0) target = $region53
    $region52: #{tpu_custom_call.1} parent=1 // pred_region
      %675 = vsyncadd [#allocation4], 0
      %s676 = sshll.u32 [#allocation11], 4
      %s677 = int_to_ptr.vmem [resolvable:$true] %s676
      %s678 = sshll.u32 %s7, 4
      %s679 = int_to_ptr.hbm [resolvable:$true] %s678
      %684 = dma.vmem_to_hbm [thread:$0]  %s677, 256, %s679, [#allocation4], 128, 128, 8
    $region53: #{tpu_custom_call.1} parent=1 // pred_fallthru
      _
    // Predicated region
    $region54: #{tpu_custom_call.1} parent=1 // pred_check
      _
    $region55: #{tpu_custom_call.1} parent=1 // pred_check_branch
      %686 = sbr.rel (0) target = $region57
    $region56: #{tpu_custom_call.1} parent=1 // pred_region
      %688 = dma.done [#allocation4], 256
    $region57: #{tpu_custom_call.1} parent=1 // pred_fallthru
      _
    %689 = vsyncpa [#allocation3], 1
    %690 = vsyncpa [#allocation6], 1
    %691 = vsyncpa [#allocation9], 1
    %692 = vsyncpa [#allocation4], 1

// kernel: tpu_custom_call.1
$region0: #{tpu_custom_call.1}
  #allocation0 [shape = 'u32[]', space=smem, size = 0x4, offset = 0x4, fixed_abs, tag = 'smem constant byte address 0x4 - core index']
  #allocation1 [shape = 'u32[72,128]{1,0:T(1,128)}', space=vmem, size = 0x9000, scoped, tag = 'internal scratch']
  %s0 = inlined_call_operand.hbm [shape: bf16[16,256], index: 0, kind: input, shape index: {}]
  %s1 = inlined_call_operand.hbm [shape: bf16[256,256], index: 1, kind: input, shape index: {}]
  %s2 = inlined_call_operand.hbm [shape: f32[1,256], index: 2, kind: input, shape index: {}]
  %s3 = inlined_call_operand.hbm [shape: bf16[256,128], index: 3, kind: input, shape index: {}]
  %s4 = inlined_call_operand.vmem [shape: f32[1,128], index: 4, kind: input, shape index: {}]
  %s5 = inlined_call_operand.hbm [shape: bf16[128,256], index: 5, kind: input, shape index: {}]
  %s6 = inlined_call_operand.vmem [shape: f32[1,256], index: 6, kind: input, shape index: {}]
  %s7 = inlined_call_operand.hbm [shape: bf16[16,256], index: 7, kind: output, shape index: {}]
  %s8 = sld [smem:[#allocation0]]
  $region58: #{tpu_custom_call.1} parent=0
    _
  %s10 = ssub.s32 1, %s8
  %s11 = scalar_select 0, %s10, %s8
  $region1: #{tpu_custom_call.1} parent=0
    #allocation2 [shape = 'u8[8192]{0}', space=vmem, size = 0x2000, scoped, tag = 'input window, operand 0, single buffered']
    #allocation3 [shape = 's32[1]{0}', space=sflag, size = 0x4, scoped, tag = 'scoped memory for tpu_custom_call.1']
    #allocation4 [shape = 's32[1]{0}', space=sflag, size = 0x4, scoped, tag = 'scoped memory for tpu_custom_call.1']
    #allocation5 [shape = 'u8[131072]{0}', space=vmem, size = 0x20000, scoped, tag = 'input window, operand 1, single buffered']
    #allocation6 [shape = 's32[1]{0}', space=sflag, size = 0x4, scoped, tag = 'scoped memory for tpu_custom_call.1']
    #allocation7 [shape = 'u8[1024]{0}', space=vmem, size = 0x400, scoped, tag = 'input window, operand 2, single buffered']
    #allocation8 [shape = 'u8[65536]{0}', space=vmem, size = 0x10000, scoped, tag = 'input window, operand 3, single buffered']
    #allocation9 [shape = 's32[1]{0}', space=sflag, size = 0x4, scoped, tag = 'scoped memory for tpu_custom_call.1']
    #allocation10 [shape = 'u8[65536]{0}', space=vmem, size = 0x10000, scoped, tag = 'input window, operand 5, single buffered']
    #allocation11 [shape = 'u8[8192]{0}', space=vmem, size = 0x2000, scoped, tag = 'output window, operand 0, single buffered']
    %12 = vsyncpa [#allocation3], 0
    %13 = vsyncpa [#allocation6], 0
    %14 = vsyncpa [#allocation9], 0
    %15 = vsyncpa [#allocation4], 0
    // Predicated region
    $region2: #{tpu_custom_call.1} parent=1 // pred_check
      _
    $region3: #{tpu_custom_call.1} parent=1 // pred_check_branch
      %17 = sbr.rel (0) target = $region5
    $region4: #{tpu_custom_call.1} parent=1 // pred_region
      %19 = vsyncadd [#allocation3], 0
      %s20 = sshll.u32 %s0, 4
      %s21 = int_to_ptr.hbm [resolvable:$true] %s20
      %s22 = sshll.u32 [#allocation2], 4
      %s23 = int_to_ptr.vmem [resolvable:$true] %s22
      %28 = dma.hbm_to_vmem [thread:$0]  %s21, 256, %s23, [#allocation3], 128, 128, 8
    $region5: #{tpu_custom_call.1} parent=1 // pred_fallthru
      _
    // Predicated region
    $region6: #{tpu_custom_call.1} parent=1 // pred_check
      _
    $region7: #{tpu_custom_call.1} parent=1 // pred_check_branch
      %30 = sbr.rel (0) target = $region9
    $region8: #{tpu_custom_call.1} parent=1 // pred_region
      %32 = vsyncadd [#allocation6], 0
      %s33 = sshll.u32 %s1, 4
      %s34 = int_to_ptr.hbm [resolvable:$true] %s33
      %s35 = sshll.u32 [#allocation5], 4
      %s36 = int_to_ptr.vmem [resolvable:$true] %s35
      %41 = dma.hbm_to_vmem [thread:$0]  %s34, 4096, %s36, [#allocation6], 128, 128, 8
    $region9: #{tpu_custom_call.1} parent=1 // pred_fallthru
      _
    // Predicated region
    $region10: #{tpu_custom_call.1} parent=1 // pred_check
      _
    $region11: #{tpu_custom_call.1} parent=1 // pred_check_branch
      %43 = sbr.rel (0) target = $region13
    $region12: #{tpu_custom_call.1} parent=1 // pred_region
      %45 = vsyncadd [#allocation6], 0
      %s47 = sshll.u32 %s2, 4
      %s48 = int_to_ptr.hbm [resolvable:$true] %s47
      %s49 = sshll.u32 [#allocation7], 4
      %s50 = int_to_ptr.vmem [resolvable:$true] %s49
      %52 = dma.hbm_to_vmem [thread:$0]  %s48, 32, %s50, [#allocation6]
    $region13: #{tpu_custom_call.1} parent=1 // pred_fallthru
      _
    // Predicated region
    $region14: #{tpu_custom_call.1} parent=1 // pred_check
      _
    $region15: #{tpu_custom_call.1} parent=1 // pred_check_branch
      %54 = sbr.rel (0) target = $region17
    $region16: #{tpu_custom_call.1} parent=1 // pred_region
      %56 = vsyncadd [#allocation9], 0
      %s57 = sshll.u32 %s3, 4
      %s58 = int_to_ptr.hbm [resolvable:$true] %s57
      %s59 = sshll.u32 [#allocation8], 4
      %s60 = int_to_ptr.vmem [resolvable:$true] %s59
      %65 = dma.hbm_to_vmem [thread:$0]  %s58, 2048, %s60, [#allocation9], 64, 64, 4
    $region17: #{tpu_custom_call.1} parent=1 // pred_fallthru
      _
    // Predicated region
    $region18: #{tpu_custom_call.1} parent=1 // pred_check
      _
    $region19: #{tpu_custom_call.1} parent=1 // pred_check_branch
      %67 = sbr.rel (0) target = $region21
    $region20: #{tpu_custom_call.1} parent=1 // pred_region
      _
    $region21: #{tpu_custom_call.1} parent=1 // pred_fallthru
      _
    // Predicated region
    $region22: #{tpu_custom_call.1} parent=1 // pred_check
      _
    $region23: #{tpu_custom_call.1} parent=1 // pred_check_branch
      %69 = sbr.rel (0) target = $region25
    $region24: #{tpu_custom_call.1} parent=1 // pred_region
      %71 = vsyncadd [#allocation9], 0
      %s72 = sshll.u32 %s5, 4
      %s73 = int_to_ptr.hbm [resolvable:$true] %s72
      %s74 = sshll.u32 [#allocation10], 4
      %s75 = int_to_ptr.vmem [resolvable:$true] %s74
      %80 = dma.hbm_to_vmem [thread:$0]  %s73, 2048, %s75, [#allocation9], 128, 128, 8
    $region25: #{tpu_custom_call.1} parent=1 // pred_fallthru
      _
    // Predicated region
    $region26: #{tpu_custom_call.1} parent=1 // pred_check
      _
    $region27: #{tpu_custom_call.1} parent=1 // pred_check_branch
      %82 = sbr.rel (0) target = $region29
    $region28: #{tpu_custom_call.1} parent=1 // pred_region
      _
    $region29: #{tpu_custom_call.1} parent=1 // pred_fallthru
      _
    // Predicated region
    $region30: #{tpu_custom_call.1} parent=1 // pred_check
      _
    $region31: #{tpu_custom_call.1} parent=1 // pred_check_branch
      %84 = sbr.rel (0) target = $region33
    $region32: #{tpu_custom_call.1} parent=1 // pred_region
      %86 = dma.done [#allocation3], 256
    $region33: #{tpu_custom_call.1} parent=1 // pred_fallthru
      _
    // Predicated region
    $region34: #{tpu_custom_call.1} parent=1 // pred_check
      _
    $region35: #{tpu_custom_call.1} parent=1 // pred_check_branch
      %88 = sbr.rel (0) target = $region37
    $region36: #{tpu_custom_call.1} parent=1 // pred_region
      %90 = dma.done [#allocation6], 4096
    $region37: #{tpu_custom_call.1} parent=1 // pred_fallthru
      _
    // Predicated region
    $region38: #{tpu_custom_call.1} parent=1 // pred_check
      _
    $region39: #{tpu_custom_call.1} parent=1 // pred_check_branch
      %92 = sbr.rel (0) target = $region41
    $region40: #{tpu_custom_call.1} parent=1 // pred_region
      %94 = dma.done [#allocation6], 32
    $region41: #{tpu_custom_call.1} parent=1 // pred_fallthru
      _
    // Predicated region
    $region42: #{tpu_custom_call.1} parent=1 // pred_check
      _
    $region43: #{tpu_custom_call.1} parent=1 // pred_check_branch
      %96 = sbr.rel (0) target = $region45
    $region44: #{tpu_custom_call.1} parent=1 // pred_region
      %98 = dma.done [#allocation9], 2048
    $region45: #{tpu_custom_call.1} parent=1 // pred_fallthru
      _
    // Predicated region
    $region46: #{tpu_custom_call.1} parent=1 // pred_check
      _
    $region47: #{tpu_custom_call.1} parent=1 // pred_check_branch
      %100 = sbr.rel (0) target = $region49
    $region48: #{tpu_custom_call.1} parent=1 // pred_region
      %102 = dma.done [#allocation9], 2048
    $region49: #{tpu_custom_call.1} parent=1 // pred_fallthru
      _
    %v103 = vld [vmem:[#allocation2] sm:$0xff]
    %v104 = vld [vmem:[#allocation2 + $0x8] sm:$0xff]
    %v105 = vld [vmem:[#allocation5] sm:$0xff]
    %v106 = vld [vmem:[#allocation5 + $0x8] sm:$0xff]
    %v107 = vld [vmem:[#allocation5 + $0x10] sm:$0xff]
    %v108 = vld [vmem:[#allocation5 + $0x18] sm:$0xff]
    %v109 = vld [vmem:[#allocation5 + $0x20] sm:$0xff]
    %v110 = vld [vmem:[#allocation5 + $0x28] sm:$0xff]
    %v111 = vld [vmem:[#allocation5 + $0x30] sm:$0xff]
    %v112 = vld [vmem:[#allocation5 + $0x38] sm:$0xff]
    %v113 = vld [vmem:[#allocation5 + $0x40] sm:$0xff]
    %v114 = vld [vmem:[#allocation5 + $0x48] sm:$0xff]
    %v115 = vld [vmem:[#allocation5 + $0x50] sm:$0xff]
    %v116 = vld [vmem:[#allocation5 + $0x58] sm:$0xff]
    %v117 = vld [vmem:[#allocation5 + $0x60] sm:$0xff]
    %v118 = vld [vmem:[#allocation5 + $0x68] sm:$0xff]
    %v119 = vld [vmem:[#allocation5 + $0x70] sm:$0xff]
    %v120 = vld [vmem:[#allocation5 + $0x78] sm:$0xff]
    %v121 = vld [vmem:[#allocation5 + $0x80] sm:$0xff]
    %v122 = vld [vmem:[#allocation5 + $0x88] sm:$0xff]
    %v123 = vld [vmem:[#allocation5 + $0x90] sm:$0xff]
    %v124 = vld [vmem:[#allocation5 + $0x98] sm:$0xff]
    %v125 = vld [vmem:[#allocation5 + $0xa0] sm:$0xff]
    %v126 = vld [vmem:[#allocation5 + $0xa8] sm:$0xff]
    %v127 = vld [vmem:[#allocation5 + $0xb0] sm:$0xff]
    %v128 = vld [vmem:[#allocation5 + $0xb8] sm:$0xff]
    %v129 = vld [vmem:[#allocation5 + $0xc0] sm:$0xff]
    %v130 = vld [vmem:[#allocation5 + $0xc8] sm:$0xff]
    %v131 = vld [vmem:[#allocation5 + $0xd0] sm:$0xff]
    %v132 = vld [vmem:[#allocation5 + $0xd8] sm:$0xff]
    %v133 = vld [vmem:[#allocation5 + $0xe0] sm:$0xff]
    %v134 = vld [vmem:[#allocation5 + $0xe8] sm:$0xff]
    %v135 = vld [vmem:[#allocation5 + $0xf0] sm:$0xff]
    %v136 = vld [vmem:[#allocation5 + $0xf8] sm:$0xff]
    %v137 = vld [vmem:[#allocation7] sm:$0x3]
    %v139 = vperm.slane %v137, 0
    %v140 = vperm.slane %v137, 1
    %v145 = vunpack.c.l.b16 %v103
    %v146 = vunpack.c.h.b16 %v103
    %v147 = vunpack.c.l.b16 %v104
    %v148 = vunpack.c.h.b16 %v104
    %v149 = vpack.c.b16 %v147, %v145
    %v150 = vpack.c.b16 %v148, %v146
    %v185 = vunpack.c.l.b16 %v105
    %v186 = vunpack.c.h.b16 %v105
    %v187 = vunpack.c.l.b16 %v106
    %v188 = vunpack.c.h.b16 %v106
    %v189 = vunpack.c.l.b16 %v107
    %v190 = vunpack.c.h.b16 %v107
    %v191 = vunpack.c.l.b16 %v108
    %v192 = vunpack.c.h.b16 %v108
    %v193 = vunpack.c.l.b16 %v109
    %v194 = vunpack.c.h.b16 %v109
    %v195 = vunpack.c.l.b16 %v110
    %v196 = vunpack.c.h.b16 %v110
    %v197 = vunpack.c.l.b16 %v111
    %v198 = vunpack.c.h.b16 %v111
    %v199 = vunpack.c.l.b16 %v112
    %v200 = vunpack.c.h.b16 %v112
    %v201 = vunpack.c.l.b16 %v113
    %v202 = vunpack.c.h.b16 %v113
    %v203 = vunpack.c.l.b16 %v114
    %v204 = vunpack.c.h.b16 %v114
    %v205 = vunpack.c.l.b16 %v115
    %v206 = vunpack.c.h.b16 %v115
    %v207 = vunpack.c.l.b16 %v116
    %v208 = vunpack.c.h.b16 %v116
    %v209 = vunpack.c.l.b16 %v117
    %v210 = vunpack.c.h.b16 %v117
    %v211 = vunpack.c.l.b16 %v118
    %v212 = vunpack.c.h.b16 %v118
    %v213 = vunpack.c.l.b16 %v119
    %v214 = vunpack.c.h.b16 %v119
    %v215 = vunpack.c.l.b16 %v120
    %v216 = vunpack.c.h.b16 %v120
    %v217 = vunpack.c.l.b16 %v121
    %v218 = vunpack.c.h.b16 %v121
    %v219 = vunpack.c.l.b16 %v122
    %v220 = vunpack.c.h.b16 %v122
    %v221 = vunpack.c.l.b16 %v123
    %v222 = vunpack.c.h.b16 %v123
    %v223 = vunpack.c.l.b16 %v124
    %v224 = vunpack.c.h.b16 %v124
    %v225 = vunpack.c.l.b16 %v125
    %v226 = vunpack.c.h.b16 %v125
    %v227 = vunpack.c.l.b16 %v126
    %v228 = vunpack.c.h.b16 %v126
    %v229 = vunpack.c.l.b16 %v127
    %v230 = vunpack.c.h.b16 %v127
    %v231 = vunpack.c.l.b16 %v128
    %v232 = vunpack.c.h.b16 %v128
    %v233 = vunpack.c.l.b16 %v129
    %v234 = vunpack.c.h.b16 %v129
    %v235 = vunpack.c.l.b16 %v130
    %v236 = vunpack.c.h.b16 %v130
    %v237 = vunpack.c.l.b16 %v131
    %v238 = vunpack.c.h.b16 %v131
    %v239 = vunpack.c.l.b16 %v132
    %v240 = vunpack.c.h.b16 %v132
    %v241 = vunpack.c.l.b16 %v133
    %v242 = vunpack.c.h.b16 %v133
    %v243 = vunpack.c.l.b16 %v134
    %v244 = vunpack.c.h.b16 %v134
    %v245 = vunpack.c.l.b16 %v135
    %v246 = vunpack.c.h.b16 %v135
    %v247 = vunpack.c.l.b16 %v136
    %v248 = vunpack.c.h.b16 %v136
    %v249 = vpack.c.b16 %v187, %v185
    %v250 = vpack.c.b16 %v188, %v186
    %v251 = vpack.c.b16 %v191, %v189
    %v252 = vpack.c.b16 %v192, %v190
    %v253 = vpack.c.b16 %v195, %v193
    %v254 = vpack.c.b16 %v196, %v194
    %v255 = vpack.c.b16 %v199, %v197
    %v256 = vpack.c.b16 %v200, %v198
    %v257 = vpack.c.b16 %v203, %v201
    %v258 = vpack.c.b16 %v204, %v202
    %v259 = vpack.c.b16 %v207, %v205
    %v260 = vpack.c.b16 %v208, %v206
    %v261 = vpack.c.b16 %v211, %v209
    %v262 = vpack.c.b16 %v212, %v210
    %v263 = vpack.c.b16 %v215, %v213
    %v264 = vpack.c.b16 %v216, %v214
    %v265 = vpack.c.b16 %v219, %v217
    %v266 = vpack.c.b16 %v220, %v218
    %v267 = vpack.c.b16 %v223, %v221
    %v268 = vpack.c.b16 %v224, %v222
    %v269 = vpack.c.b16 %v227, %v225
    %v270 = vpack.c.b16 %v228, %v226
    %v271 = vpack.c.b16 %v231, %v229
    %v272 = vpack.c.b16 %v232, %v230
    %v273 = vpack.c.b16 %v235, %v233
    %v274 = vpack.c.b16 %v236, %v234
    %v275 = vpack.c.b16 %v239, %v237
    %v276 = vpack.c.b16 %v240, %v238
    %v277 = vpack.c.b16 %v243, %v241
    %v278 = vpack.c.b16 %v244, %v242
    %v279 = vpack.c.b16 %v247, %v245
    %v280 = vpack.c.b16 %v248, %v246
    %313 = vmatpush.bf16.msra.mxu0 %v263
    %314 = vmatpush.bf16.msra.mxu0 %v261
    %315 = vmatpush.bf16.msra.mxu0 %v259
    %316 = vmatpush.bf16.msra.mxu0 %v257
    %317 = vmatpush.bf16.msra.mxu0 %v255
    %318 = vmatpush.bf16.msra.mxu0 %v253
    %319 = vmatpush.bf16.msra.mxu0 %v251
    %320 = vmatpush.bf16.msra.mxu0 %v249
    %321 = vmatmul.bf16.gmra.mxu0 %v149
    %v322 = vpop.f32.mrf.mxu0
    %v323 = vadd.f32 %v139, %v322
    %v324 = vpop.f32.mrf.mxu0
    %v325 = vadd.f32 %v139, %v324
    %326 = vdwg.mxu0
    %327 = vmatpush.bf16.msra.mxu0 %v279
    %328 = vmatpush.bf16.msra.mxu0 %v277
    %329 = vmatpush.bf16.msra.mxu0 %v275
    %330 = vmatpush.bf16.msra.mxu0 %v273
    %331 = vmatpush.bf16.msra.mxu0 %v271
    %332 = vmatpush.bf16.msra.mxu0 %v269
    %333 = vmatpush.bf16.msra.mxu0 %v267
    %334 = vmatpush.bf16.msra.mxu0 %v265
    %335 = vmatmul.bf16.gmra.mxu0 %v150
    %v336 = vpop.f32.mrf.mxu0
    %v337 = vadd.f32 %v323, %v336
    %v338 = vpop.f32.mrf.mxu0
    %v339 = vadd.f32 %v325, %v338
    %340 = vdwg.mxu0
    %341 = vmatpush.bf16.msra.mxu0 %v264
    %342 = vmatpush.bf16.msra.mxu0 %v262
    %343 = vmatpush.bf16.msra.mxu0 %v260
    %344 = vmatpush.bf16.msra.mxu0 %v258
    %345 = vmatpush.bf16.msra.mxu0 %v256
    %346 = vmatpush.bf16.msra.mxu0 %v254
    %347 = vmatpush.bf16.msra.mxu0 %v252
    %348 = vmatpush.bf16.msra.mxu0 %v250
    %349 = vmatmul.bf16.gmra.mxu0 %v149
    %v350 = vpop.f32.mrf.mxu0
    %v351 = vadd.f32 %v140, %v350
    %v352 = vpop.f32.mrf.mxu0
    %v353 = vadd.f32 %v140, %v352
    %354 = vdwg.mxu0
    %355 = vmatpush.bf16.msra.mxu0 %v280
    %356 = vmatpush.bf16.msra.mxu0 %v278
    %357 = vmatpush.bf16.msra.mxu0 %v276
    %358 = vmatpush.bf16.msra.mxu0 %v274
    %359 = vmatpush.bf16.msra.mxu0 %v272
    %360 = vmatpush.bf16.msra.mxu0 %v270
    %361 = vmatpush.bf16.msra.mxu0 %v268
    %362 = vmatpush.bf16.msra.mxu0 %v266
    %363 = vmatmul.bf16.gmra.mxu0 %v150
    %v364 = vpop.f32.mrf.mxu0
    %v365 = vadd.f32 %v351, %v364
    %v366 = vpop.f32.mrf.mxu0
    %v367 = vadd.f32 %v353, %v366
    %368 = vdwg.mxu0
    %v369 = vpack.c.bf16 %v339, %v337
    %v370 = vpack.c.bf16 %v367, %v365
    %v371 = vld [vmem:[#allocation8] sm:$0xf]
    %v372 = vld [vmem:[#allocation8 + $0x4] sm:$0xf]
    %v373 = vld [vmem:[#allocation8 + $0x8] sm:$0xf]
    %v374 = vld [vmem:[#allocation8 + $0xc] sm:$0xf]
    %v375 = vld [vmem:[#allocation8 + $0x10] sm:$0xf]
    %v376 = vld [vmem:[#allocation8 + $0x14] sm:$0xf]
    %v377 = vld [vmem:[#allocation8 + $0x18] sm:$0xf]
    %v378 = vld [vmem:[#allocation8 + $0x1c] sm:$0xf]
    %v379 = vld [vmem:[#allocation8 + $0x20] sm:$0xf]
    %v380 = vld [vmem:[#allocation8 + $0x24] sm:$0xf]
    %v381 = vld [vmem:[#allocation8 + $0x28] sm:$0xf]
    %v382 = vld [vmem:[#allocation8 + $0x2c] sm:$0xf]
    %v383 = vld [vmem:[#allocation8 + $0x30] sm:$0xf]
    %v384 = vld [vmem:[#allocation8 + $0x34] sm:$0xf]
    %v385 = vld [vmem:[#allocation8 + $0x38] sm:$0xf]
    %v386 = vld [vmem:[#allocation8 + $0x3c] sm:$0xf]
    %v387 = vld [vmem:[#allocation8 + $0x40] sm:$0xf]
    %v388 = vld [vmem:[#allocation8 + $0x44] sm:$0xf]
    %v389 = vld [vmem:[#allocation8 + $0x48] sm:$0xf]
    %v390 = vld [vmem:[#allocation8 + $0x4c] sm:$0xf]
    %v391 = vld [vmem:[#allocation8 + $0x50] sm:$0xf]
    %v392 = vld [vmem:[#allocation8 + $0x54] sm:$0xf]
    %v393 = vld [vmem:[#allocation8 + $0x58] sm:$0xf]
    %v394 = vld [vmem:[#allocation8 + $0x5c] sm:$0xf]
    %v395 = vld [vmem:[#allocation8 + $0x60] sm:$0xf]
    %v396 = vld [vmem:[#allocation8 + $0x64] sm:$0xf]
    %v397 = vld [vmem:[#allocation8 + $0x68] sm:$0xf]
    %v398 = vld [vmem:[#allocation8 + $0x6c] sm:$0xf]
    %v399 = vld [vmem:[#allocation8 + $0x70] sm:$0xf]
    %v400 = vld [vmem:[#allocation8 + $0x74] sm:$0xf]
    %v401 = vld [vmem:[#allocation8 + $0x78] sm:$0xf]
    %v402 = vld [vmem:[#allocation8 + $0x7c] sm:$0xf]
    %v403 = vld [vmem:[%s4] sm:$0x1]
    %v405 = vperm.slane %v403, 0
    %v439 = vunpack.c.l.b16 %v371
    %v440 = vunpack.c.l.b16 %v372
    %v441 = vunpack.c.l.b16 %v373
    %v442 = vunpack.c.l.b16 %v374
    %v443 = vunpack.c.l.b16 %v375
    %v444 = vunpack.c.l.b16 %v376
    %v445 = vunpack.c.l.b16 %v377
    %v446 = vunpack.c.l.b16 %v378
    %v447 = vunpack.c.l.b16 %v379
    %v448 = vunpack.c.l.b16 %v380
    %v449 = vunpack.c.l.b16 %v381
    %v450 = vunpack.c.l.b16 %v382
    %v451 = vunpack.c.l.b16 %v383
    %v452 = vunpack.c.l.b16 %v384
    %v453 = vunpack.c.l.b16 %v385
    %v454 = vunpack.c.l.b16 %v386
    %v455 = vunpack.c.l.b16 %v387
    %v456 = vunpack.c.l.b16 %v388
    %v457 = vunpack.c.l.b16 %v389
    %v458 = vunpack.c.l.b16 %v390
    %v459 = vunpack.c.l.b16 %v391
    %v460 = vunpack.c.l.b16 %v392
    %v461 = vunpack.c.l.b16 %v393
    %v462 = vunpack.c.l.b16 %v394
    %v463 = vunpack.c.l.b16 %v395
    %v464 = vunpack.c.l.b16 %v396
    %v465 = vunpack.c.l.b16 %v397
    %v466 = vunpack.c.l.b16 %v398
    %v467 = vunpack.c.l.b16 %v399
    %v468 = vunpack.c.l.b16 %v400
    %v469 = vunpack.c.l.b16 %v401
    %v470 = vunpack.c.l.b16 %v402
    %v471 = vpack.c.b16 %v440, %v439
    %v472 = vpack.c.b16 %v442, %v441
    %v473 = vpack.c.b16 %v444, %v443
    %v474 = vpack.c.b16 %v446, %v445
    %v475 = vpack.c.b16 %v448, %v447
    %v476 = vpack.c.b16 %v450, %v449
    %v477 = vpack.c.b16 %v452, %v451
    %v478 = vpack.c.b16 %v454, %v453
    %v479 = vpack.c.b16 %v456, %v455
    %v480 = vpack.c.b16 %v458, %v457
    %v481 = vpack.c.b16 %v460, %v459
    %v482 = vpack.c.b16 %v462, %v461
    %v483 = vpack.c.b16 %v464, %v463
    %v484 = vpack.c.b16 %v466, %v465
    %v485 = vpack.c.b16 %v468, %v467
    %v486 = vpack.c.b16 %v470, %v469
    %503 = vmatpush.bf16.msra.mxu0 %v478
    %504 = vmatpush.bf16.msra.mxu0 %v477
    %505 = vmatpush.bf16.msra.mxu0 %v476
    %506 = vmatpush.bf16.msra.mxu0 %v475
    %507 = vmatpush.bf16.msra.mxu0 %v474
    %508 = vmatpush.bf16.msra.mxu0 %v473
    %509 = vmatpush.bf16.msra.mxu0 %v472
    %510 = vmatpush.bf16.msra.mxu0 %v471
    %511 = vmatmul.bf16.gmra.mxu0 %v369
    %v512 = vpop.f32.mrf.mxu0
    %v513 = vadd.f32 %v405, %v512
    %v514 = vpop.f32.mrf.mxu0
    %v515 = vadd.f32 %v405, %v514
    %516 = vdwg.mxu0
    %517 = vmatpush.bf16.msra.mxu0 %v486
    %518 = vmatpush.bf16.msra.mxu0 %v485
    %519 = vmatpush.bf16.msra.mxu0 %v484
    %520 = vmatpush.bf16.msra.mxu0 %v483
    %521 = vmatpush.bf16.msra.mxu0 %v482
    %522 = vmatpush.bf16.msra.mxu0 %v481
    %523 = vmatpush.bf16.msra.mxu0 %v480
    %524 = vmatpush.bf16.msra.mxu0 %v479
    %525 = vmatmul.bf16.gmra.mxu0 %v370
    %v526 = vpop.f32.mrf.mxu0
    %v527 = vadd.f32 %v513, %v526
    %v528 = vpop.f32.mrf.mxu0
    %v529 = vadd.f32 %v515, %v528
    %530 = vdwg.mxu0
    %v531 = vmax.f32 %v527, 0.0
    %v532 = vmax.f32 %v529, 0.0
    %v533 = vpack.c.bf16 %v532, %v531
    %v534 = vld [vmem:[#allocation10] sm:$0xff]
    %v535 = vld [vmem:[#allocation10 + $0x8] sm:$0xff]
    %v536 = vld [vmem:[#allocation10 + $0x10] sm:$0xff]
    %v537 = vld [vmem:[#allocation10 + $0x18] sm:$0xff]
    %v538 = vld [vmem:[#allocation10 + $0x20] sm:$0xff]
    %v539 = vld [vmem:[#allocation10 + $0x28] sm:$0xff]
    %v540 = vld [vmem:[#allocation10 + $0x30] sm:$0xff]
    %v541 = vld [vmem:[#allocation10 + $0x38] sm:$0xff]
    %v542 = vld [vmem:[#allocation10 + $0x40] sm:$0xff]
    %v543 = vld [vmem:[#allocation10 + $0x48] sm:$0xff]
    %v544 = vld [vmem:[#allocation10 + $0x50] sm:$0xff]
    %v545 = vld [vmem:[#allocation10 + $0x58] sm:$0xff]
    %v546 = vld [vmem:[#allocation10 + $0x60] sm:$0xff]
    %v547 = vld [vmem:[#allocation10 + $0x68] sm:$0xff]
    %v548 = vld [vmem:[#allocation10 + $0x70] sm:$0xff]
    %v549 = vld [vmem:[#allocation10 + $0x78] sm:$0xff]
    %v550 = vld [vmem:[%s6] sm:$0x3]
    %v552 = vperm.slane %v550, 0
    %v553 = vperm.slane %v550, 1
    %v572 = vunpack.c.l.b16 %v534
    %v573 = vunpack.c.h.b16 %v534
    %v574 = vunpack.c.l.b16 %v535
    %v575 = vunpack.c.h.b16 %v535
    %v576 = vunpack.c.l.b16 %v536
    %v577 = vunpack.c.h.b16 %v536
    %v578 = vunpack.c.l.b16 %v537
    %v579 = vunpack.c.h.b16 %v537
    %v580 = vunpack.c.l.b16 %v538
    %v581 = vunpack.c.h.b16 %v538
    %v582 = vunpack.c.l.b16 %v539
    %v583 = vunpack.c.h.b16 %v539
    %v584 = vunpack.c.l.b16 %v540
    %v585 = vunpack.c.h.b16 %v540
    %v586 = vunpack.c.l.b16 %v541
    %v587 = vunpack.c.h.b16 %v541
    %v588 = vunpack.c.l.b16 %v542
    %v589 = vunpack.c.h.b16 %v542
    %v590 = vunpack.c.l.b16 %v543
    %v591 = vunpack.c.h.b16 %v543
    %v592 = vunpack.c.l.b16 %v544
    %v593 = vunpack.c.h.b16 %v544
    %v594 = vunpack.c.l.b16 %v545
    %v595 = vunpack.c.h.b16 %v545
    %v596 = vunpack.c.l.b16 %v546
    %v597 = vunpack.c.h.b16 %v546
    %v598 = vunpack.c.l.b16 %v547
    %v599 = vunpack.c.h.b16 %v547
    %v600 = vunpack.c.l.b16 %v548
    %v601 = vunpack.c.h.b16 %v548
    %v602 = vunpack.c.l.b16 %v549
    %v603 = vunpack.c.h.b16 %v549
    %v604 = vpack.c.b16 %v574, %v572
    %v605 = vpack.c.b16 %v575, %v573
    %v606 = vpack.c.b16 %v578, %v576
    %v607 = vpack.c.b16 %v579, %v577
    %v608 = vpack.c.b16 %v582, %v580
    %v609 = vpack.c.b16 %v583, %v581
    %v610 = vpack.c.b16 %v586, %v584
    %v611 = vpack.c.b16 %v587, %v585
    %v612 = vpack.c.b16 %v590, %v588
    %v613 = vpack.c.b16 %v591, %v589
    %v614 = vpack.c.b16 %v594, %v592
    %v615 = vpack.c.b16 %v595, %v593
    %v616 = vpack.c.b16 %v598, %v596
    %v617 = vpack.c.b16 %v599, %v597
    %v618 = vpack.c.b16 %v602, %v600
    %v619 = vpack.c.b16 %v603, %v601
    %636 = vmatpush.bf16.msra.mxu0 %v618
    %637 = vmatpush.bf16.msra.mxu0 %v616
    %638 = vmatpush.bf16.msra.mxu0 %v614
    %639 = vmatpush.bf16.msra.mxu0 %v612
    %640 = vmatpush.bf16.msra.mxu0 %v610
    %641 = vmatpush.bf16.msra.mxu0 %v608
    %642 = vmatpush.bf16.msra.mxu0 %v606
    %643 = vmatpush.bf16.msra.mxu0 %v604
    %644 = vmatmul.bf16.gmra.mxu0 %v533
    %v645 = vpop.f32.mrf.mxu0
    %v646 = vadd.f32 %v552, %v645
    %v647 = vpop.f32.mrf.mxu0
    %v648 = vadd.f32 %v552, %v647
    %649 = vdwg.mxu0
    %650 = vmatpush.bf16.msra.mxu0 %v619
    %651 = vmatpush.bf16.msra.mxu0 %v617
    %652 = vmatpush.bf16.msra.mxu0 %v615
    %653 = vmatpush.bf16.msra.mxu0 %v613
    %654 = vmatpush.bf16.msra.mxu0 %v611
    %655 = vmatpush.bf16.msra.mxu0 %v609
    %656 = vmatpush.bf16.msra.mxu0 %v607
    %657 = vmatpush.bf16.msra.mxu0 %v605
    %658 = vmatmul.bf16.gmra.mxu0 %v533
    %v659 = vpop.f32.mrf.mxu0
    %v660 = vadd.f32 %v553, %v659
    %v661 = vpop.f32.mrf.mxu0
    %v662 = vadd.f32 %v553, %v661
    %663 = vdwg.mxu0
    %v664 = vadd.f32 %v646, %v337
    %v665 = vadd.f32 %v660, %v365
    %v666 = vadd.f32 %v648, %v339
    %v667 = vadd.f32 %v662, %v367
    %v668 = vpack.c.bf16 %v665, %v664
    %v669 = vpack.c.bf16 %v667, %v666
    %670 = vst [vmem:[#allocation11] sm:$0xff] %v668
    %671 = vst [vmem:[#allocation11 + $0x8] sm:$0xff] %v669
    // Predicated region
    $region50: #{tpu_custom_call.1} parent=1 // pred_check
      _
    $region51: #{tpu_custom_call.1} parent=1 // pred_check_branch
      %673 = sbr.rel (0) target = $region53
    $region52: #{tpu_custom_call.1} parent=1 // pred_region
      %675 = vsyncadd [#allocation4], 0
      %s676 = sshll.u32 [#allocation11], 4
      %s677 = int_to_ptr.vmem [resolvable:$true] %s676
      %s678 = sshll.u32 %s7, 4
      %s679 = int_to_ptr.hbm [resolvable:$true] %s678
      %684 = dma.vmem_to_hbm [thread:$0]  %s677, 256, %s679, [#allocation4], 128, 128, 8
    $region53: #{tpu_custom_call.1} parent=1 // pred_fallthru
      _
    // Predicated region
    $region54: #{tpu_custom_call.1} parent=1 // pred_check
      _
    $region55: #{tpu_custom_call.1} parent=1 // pred_check_branch
      %686 = sbr.rel (0) target = $region57
    $region56: #{tpu_custom_call.1} parent=1 // pred_region
      %688 = dma.done [#allocation4], 256
    $region57: #{tpu_custom_call.1} parent=1 // pred_fallthru
      _
    %689 = vsyncpa [#allocation3], 1
    %690 = vsyncpa [#allocation6], 1
    %691 = vsyncpa [#allocation9], 1
    %692 = vsyncpa [#allocation4], 1

</llo_original>
